<compile_context>
chip_gen: v7x
topology: tpu7x:2x2x1
jax: 0.10.0
libtpu: 0.0.40
codegen_flags: <defaults>
</compile_context>

<pallas_src>
import math

import jax
import jax.numpy as jnp
from jax.experimental import pallas as pl
from jax.experimental.pallas import tpu as pltpu


# ---------------------------------------------------------------------------
# Kernels
# ---------------------------------------------------------------------------

def _pe_add_slab_kernel(scale_ref, x_ref, pe_ref, o_ref):
    """Lane-dense path.  x_ref/o_ref: (ts, B*D); pe_ref: (ts, D); D % 128 == 0."""
    D = pe_ref.shape[-1]
    B = x_ref.shape[-1] // D                      # static Python int
    # Apply the learned scalar once on the narrow pe tile, cast once to the
    # activation dtype (bf16 add on v6e/v7x; exact for fp32 activations).
    # TODO(synk): on v5e (no bf16 VALU) an fp32 add path would be preferable for
    # bf16 activations; kept in activation dtype for simplicity.
    spe = (scale_ref[0] * pe_ref[...]).astype(o_ref.dtype)
    for b in range(B):                            # static loop, static slices = views
        lo, hi = b * D, (b + 1) * D
        o_ref[:, lo:hi] = x_ref[:, lo:hi] + spe


def _pe_add_bcast_kernel(scale_ref, x_ref, pe_ref, o_ref):
    """Fallback path.  x_ref/o_ref: (ts, B, D); pe_ref: (ts, D)."""
    spe = (scale_ref[0] * pe_ref[...]).astype(o_ref.dtype)
    o_ref[...] = x_ref[...] + spe[:, None, :]


# ---------------------------------------------------------------------------
# Host-side glue
# ---------------------------------------------------------------------------

def make_positional_encoding_table(d_model: int, max_len: int = 5000) -> jnp.ndarray:
    """Sinusoidal table, shape (max_len, d_model), float32 (plain JAX glue)."""
    position = jnp.arange(0, max_len, dtype=jnp.float32)[:, None]
    div_term = jnp.exp(
        jnp.arange(0, d_model, 2, dtype=jnp.float32) * (-math.log(10000.0) / d_model)
    )
    angles = position * div_term
    pe = jnp.zeros((max_len, d_model), dtype=jnp.float32)
    pe = pe.at[:, 0::2].set(jnp.sin(angles))
    # Slice keeps odd d_model well-defined (PyTorch module assumes even d_model).
    pe = pe.at[:, 1::2].set(jnp.cos(angles)[:, : d_model // 2])
    return pe


def _chip_constants():
    """(target_block_bytes, vmem_limit_bytes) picked per TPU generation."""
    try:
        vmem_cap = pltpu.get_tpu_info().vmem_capacity_bytes
    except Exception:
        vmem_cap = 64 * 1024 * 1024           # conservative fallback (v7x per-TC)
    if vmem_cap >= 128 * 1024 * 1024:         # v5e / v6e: 128 MiB VMEM
        return 8 * 1024 * 1024, 96 * 1024 * 1024
    return 4 * 1024 * 1024, 48 * 1024 * 1024  # v7x: 64 MiB VMEM per TC


def _choose_seq_tile(S: int, bytes_per_row: int, target_bytes: int,
                     min_steps: int = 8) -> int:
    """Rows per block: multiple of 8, ~target_bytes of x per block, capped so the
    grid keeps >= min_steps steps whenever S allows it (megacore / pipelining)."""
    rows = max(8, target_bytes // max(bytes_per_row, 1))
    ts = max(8, (rows // 8) * 8)
    s_ceil = ((S + 7) // 8) * 8
    ts = min(ts, s_ceil)
    if S >= min_steps * 8:
        cap = max(8, ((S // min_steps) // 8) * 8)
        ts = min(ts, cap)
    return int(ts)


def positional_encoding_forward(
    x: jnp.ndarray,
    pe_table: jnp.ndarray,
    scale: jnp.ndarray,
    *,
    target_block_bytes: int | None = None,
    vmem_limit_bytes: int | None = None,
    donate_x: bool = False,
) -> jnp.ndarray:
    """x: (S, B, D) seq-first; pe_table: (max_len, D) float32; scale: (1,) float32."""
    S, B, D = x.shape
    max_len, d_pe = pe_table.shape
    assert d_pe == D and S <= max_len

    if target_block_bytes is None or vmem_limit_bytes is None:
        tb, vl = _chip_constants()
        target_block_bytes = target_block_bytes or tb
        vmem_limit_bytes = vmem_limit_bytes or vl

    # bf16 activations: ship a bf16 pe table (halves pe HBM reads, bf16 add path).
    pe_in = pe_table if x.dtype == jnp.float32 else pe_table.astype(x.dtype)
    scale = scale.astype(jnp.float32).reshape((1,))

    bytes_per_row = B * D * x.dtype.itemsize
    ts = _choose_seq_tile(S, bytes_per_row, target_block_bytes)
    grid = (pl.cdiv(S, ts),)
    # Note: the last pe block may be a partial boundary block (block start is
    # always < S <= max_len); Pallas pads it and the padding only feeds padded
    # output rows that are discarded.

    compiler_params = pltpu.CompilerParams(
        dimension_semantics=("parallel",),     # lets v7x shard the seq axis over both TCs
        vmem_limit_bytes=vmem_limit_bytes,
    )
    io_alias = {1: 0} if donate_x else {}      # reuse x's HBM buffer if caller donates

    if D % 128 == 0:
        # Lane-dense slab path: free reshape for the contiguous seq-first layout.
        x2 = x.reshape(S, B * D)
        out2 = pl.pallas_call(
            _pe_add_slab_kernel,
            out_shape=jax.ShapeDtypeStruct((S, B * D), x.dtype),
            grid=grid,
            in_specs=[
                pl.BlockSpec(memory_space=pltpu.SMEM),           # scale (1,)
                pl.BlockSpec((ts, B * D), lambda i: (i, 0)),     # x slab
                pl.BlockSpec((ts, D), lambda i: (i, 0)),         # pe rows (full table in HBM)
            ],
            out_specs=pl.BlockSpec((ts, B * D), lambda i: (i, 0)),
            input_output_aliases=io_alias,
            compiler_params=compiler_params,
        )(scale, x2, pe_in)
        return out2.reshape(S, B, D)

    # Fallback: d_model not lane-aligned (e.g. small smoke-test dims) -> 3-D blocks,
    # broadcast pe over the batch axis inside the kernel.
    return pl.pallas_call(
        _pe_add_bcast_kernel,
        out_shape=jax.ShapeDtypeStruct((S, B, D), x.dtype),
        grid=grid,
        in_specs=[
            pl.BlockSpec(memory_space=pltpu.SMEM),               # scale (1,)
            pl.BlockSpec((ts, B, D), lambda i: (i, 0, 0)),       # x block
            pl.BlockSpec((ts, D), lambda i: (i, 0)),             # pe rows
        ],
        out_specs=pl.BlockSpec((ts, B, D), lambda i: (i, 0, 0)),
        input_output_aliases=io_alias,
        compiler_params=compiler_params,
    )(scale, x, pe_in)


# ---------------------------------------------------------------------------
# Smoke test
# ---------------------------------------------------------------------------

if __name__ == "__main__":
    key = jax.random.PRNGKey(0)
    scale = jnp.ones((1,), dtype=jnp.float32)   # matches __init__: scale = ones(1)

    # 1) Module-native small shapes (seq=8, batch=2, d_model=32) -> fallback path.
    S, B, D = 8, 2, 32
    pe_table = make_positional_encoding_table(D, max_len=5000)
    x = jax.random.normal(key, (S, B, D), dtype=jnp.float32)
    out = jax.block_until_ready(positional_encoding_forward(x, pe_table, scale))
    ref = x + scale[0] * pe_table[:S, :][:, None, :]
    assert out.shape == (S, B, D)
    assert jnp.allclose(out, ref, atol=1e-6), "mismatch vs reference (bcast path)"

    # 2) Lane-dense slab path (d_model multiple of 128).
    S2, B2, D2 = 16, 2, 128
    pe_table2 = make_positional_encoding_table(D2, max_len=5000)
    x2 = jax.random.normal(jax.random.fold_in(key, 1), (S2, B2, D2), dtype=jnp.float32)
    out2 = jax.block_until_ready(positional_encoding_forward(x2, pe_table2, scale))
    ref2 = x2 + scale[0] * pe_table2[:S2, :][:, None, :]
    assert out2.shape == (S2, B2, D2)
    assert jnp.allclose(out2, ref2, atol=1e-6), "mismatch vs reference (slab path)"

    print("KERNEL_OK")
</pallas_src>

<mosaic_0001>
module attributes {stable_mosaic.version = 11 : i64} {
  func.func @_pe_add_bcast_kernel(%arg0: i32, %arg1: memref<1xf32, #tpu.memory_space<smem>>, %arg2: memref<8x2x32xf32, #tpu.memory_space<vmem>>, %arg3: memref<8x32xf32, #tpu.memory_space<vmem>>, %arg4: memref<8x2x32xf32, #tpu.memory_space<vmem>>) attributes {dimension_semantics = [#tpu.dimension_semantics<parallel>], iteration_bounds = array<i64: 1>, scalar_prefetch = 0 : i64, scratch_operands = 0 : i64, tpu.core_type = #tpu.core_type<tc>, window_params = [{transform_indices = @transform_0, window_bounds = array<i64: 1>}, {transform_indices = @transform_1, window_bounds = array<i64: 8, 2, 32>}, {transform_indices = @transform_2, window_bounds = array<i64: 8, 32>}, {transform_indices = @transform_3, window_bounds = array<i64: 8, 2, 32>}]} {
    %c0 = arith.constant 0 : index
    %0 = memref.load %arg1[%c0] : memref<1xf32, #tpu.memory_space<smem>>
    %c0_0 = arith.constant 0 : index
    %c0_1 = arith.constant 0 : index
    %1 = vector.load %arg3[%c0_0, %c0_1] : memref<8x32xf32, #tpu.memory_space<vmem>>, vector<8x32xf32>
    %2 = vector.broadcast %0 : f32 to vector<8x32xf32>
    %3 = arith.mulf %2, %1 : vector<8x32xf32>
    %c0_2 = arith.constant 0 : index
    %c0_3 = arith.constant 0 : index
    %c0_4 = arith.constant 0 : index
    %4 = vector.load %arg2[%c0_2, %c0_3, %c0_4] : memref<8x2x32xf32, #tpu.memory_space<vmem>>, vector<8x2x32xf32>
    %5 = vector.shape_cast %3 : vector<8x32xf32> to vector<8x1x32xf32>
    %6 = vector.broadcast %5 : vector<8x1x32xf32> to vector<8x2x32xf32>
    %7 = arith.addf %4, %6 : vector<8x2x32xf32>
    %c0_5 = arith.constant 0 : index
    %c0_6 = arith.constant 0 : index
    %c0_7 = arith.constant 0 : index
    %8 = vector.load %arg4[%c0_5, %c0_6, %c0_7] : memref<8x2x32xf32, #tpu.memory_space<vmem>>, vector<8x2x32xf32>
    tpu.vector_store %arg4[%c0_5, %c0_6, %c0_7], %7 {strides = array<i32>} : memref<8x2x32xf32, #tpu.memory_space<vmem>>, vector<8x2x32xf32>,
    return
  }
  func.func @transform_0(%arg0: i32) -> i32 {
    %c0_i32 = arith.constant 0 : i32
    %c0_i32_0 = arith.constant 0 : i32
    return %c0_i32 : i32
  }
  func.func @transform_1(%arg0: i32) -> (i32, i32, i32) {
    %c0_i32 = arith.constant 0 : i32
    %c0_i32_0 = arith.constant 0 : i32
    %c0_i32_1 = arith.constant 0 : i32
    return %arg0, %c0_i32, %c0_i32_0 : i32, i32, i32
  }
  func.func @transform_2(%arg0: i32) -> (i32, i32) {
    %c0_i32 = arith.constant 0 : i32
    %c0_i32_0 = arith.constant 0 : i32
    return %arg0, %c0_i32 : i32, i32
  }
  func.func @transform_3(%arg0: i32) -> (i32, i32, i32) {
    %c0_i32 = arith.constant 0 : i32
    %c0_i32_0 = arith.constant 0 : i32
    %c0_i32_1 = arith.constant 0 : i32
    return %arg0, %c0_i32, %c0_i32_0 : i32, i32, i32
  }
}

</mosaic_0001>

<llo_original>
// kernel: tpu_custom_call.1
$region0: #{tpu_custom_call.1}
  #allocation0 [shape = 'u32[]', space=smem, size = 0x4, offset = 0x4, fixed_abs, tag = 'smem constant byte address 0x4 - core index']
  #allocation1 [shape = 'u32[144,128]{1,0:T(1,128)}', space=vmem, size = 0x12000, scoped, tag = 'internal scratch']
  #allocation2 [shape = 'f32[1]{0:T(128)S(6)}', space=smem, size = 0x200, scoped, tag = 'scoped memory for tpu_custom_call.1']
  %s0 = inlined_call_operand.<no memory space> [shape: f32[1], index: 0, kind: input, shape index: {}]
  %s1 = inlined_call_operand.vmem [shape: f32[8,2,32], index: 1, kind: input, shape index: {}]
  %s2 = inlined_call_operand.vmem [shape: f32[5000,32], index: 2, kind: input, shape index: {}]
  %s3 = inlined_call_operand.hbm [shape: f32[8,2,32], index: 3, kind: output, shape index: {}]
  %s4 = sld [smem:[#allocation0]]
  $region22: #{tpu_custom_call.1} parent=0
    _
  %s6 = ssub.s32 1, %s4
  %s7 = scalar_select 0, %s6, %s4
  %8 = sst [smem:[#allocation2]] %s0
  $region1: #{tpu_custom_call.1} parent=0
    #allocation3 [shape = 'u8[8192]{0}', space=vmem, size = 0x2000, scoped, tag = 'output window, operand 0, single buffered']
    #allocation4 [shape = 's32[1]{0}', space=sflag, size = 0x4, scoped, tag = 'scoped memory for tpu_custom_call.1']
    %9 = vsyncpa [#allocation4], 0
    // Predicated region
    $region2: #{tpu_custom_call.1} parent=1 // pred_check
      _
    $region3: #{tpu_custom_call.1} parent=1 // pred_check_branch
      %11 = sbr.rel (0) target = $region5
    $region4: #{tpu_custom_call.1} parent=1 // pred_region
      _
    $region5: #{tpu_custom_call.1} parent=1 // pred_fallthru
      _
    // Predicated region
    $region6: #{tpu_custom_call.1} parent=1 // pred_check
      _
    $region7: #{tpu_custom_call.1} parent=1 // pred_check_branch
      %13 = sbr.rel (0) target = $region9
    $region8: #{tpu_custom_call.1} parent=1 // pred_region
      _
    $region9: #{tpu_custom_call.1} parent=1 // pred_fallthru
      _
    // Predicated region
    $region10: #{tpu_custom_call.1} parent=1 // pred_check
      _
    $region11: #{tpu_custom_call.1} parent=1 // pred_check_branch
      %15 = sbr.rel (0) target = $region13
    $region12: #{tpu_custom_call.1} parent=1 // pred_region
      _
    $region13: #{tpu_custom_call.1} parent=1 // pred_fallthru
      _
    %s16 = sld [smem:[#allocation2]]
    %v17 = vld [vmem:[%s2] sm:$0xff]
    %v18 = vstv %s16
    %v19 = vmul.f32 %v18, %v17
    %v20 = vld [vmem:[%s1] sm:$0x3]
    %v21 = vld [vmem:[%s1 + $0x2] sm:$0x3]
    %v22 = vld [vmem:[%s1 + $0x4] sm:$0x3]
    %v23 = vld [vmem:[%s1 + $0x6] sm:$0x3]
    %v24 = vld [vmem:[%s1 + $0x8] sm:$0x3]
    %v25 = vld [vmem:[%s1 + $0xa] sm:$0x3]
    %v26 = vld [vmem:[%s1 + $0xc] sm:$0x3]
    %v27 = vld [vmem:[%s1 + $0xe] sm:$0x3]
    %v29 = vcombine.high %v19, %v19
    %v31 = vunpack.c.l.s4 1966171168
    %v32 = vunpack.c.0.s8 %v31
    %v33 = vlaneseq
    %v34 = vshrl.u32 %v33, 7
    %v35 = vsub.s32 %v32, %v34
    %v36 = vrot.slane %v19, %v35
    %v38 = vunpack.c.l.s4 1966171168
    %v39 = vunpack.c.0.s8 %v38
    %v40 = vlaneseq
    %v41 = vshrl.u32 %v40, 7
    %v42 = vsub.s32 %v39, %v41
    %v43 = vrot.slane %v29, %v42
    %v44 = vcombine.high %v36, %v36
    %v45 = vcombine.high %v43, %v43
    %v47 = vunpack.c.l.s4 1966171168
    %v48 = vunpack.c.0.s8 %v47
    %v49 = vlaneseq
    %v50 = vshrl.u32 %v49, 7
    %v51 = vsub.s32 %v48, %v50
    %v52 = vrot.slane %v36, %v51
    %v54 = vunpack.c.l.s4 1966171168
    %v55 = vunpack.c.0.s8 %v54
    %v56 = vlaneseq
    %v57 = vshrl.u32 %v56, 7
    %v58 = vsub.s32 %v55, %v57
    %v59 = vrot.slane %v43, %v58
    %v61 = vunpack.c.l.s4 1966171168
    %v62 = vunpack.c.0.s8 %v61
    %v63 = vlaneseq
    %v64 = vshrl.u32 %v63, 7
    %v65 = vsub.s32 %v62, %v64
    %v66 = vrot.slane %v44, %v65
    %v68 = vunpack.c.l.s4 1966171168
    %v69 = vunpack.c.0.s8 %v68
    %v70 = vlaneseq
    %v71 = vshrl.u32 %v70, 7
    %v72 = vsub.s32 %v69, %v71
    %v73 = vrot.slane %v45, %v72
    %v74 = vcombine.high %v52, %v52
    %v75 = vcombine.high %v59, %v59
    %v76 = vcombine.high %v66, %v66
    %v77 = vcombine.high %v73, %v73
    %v78 = vlaneseq
    %v79 = vshrl.u32 %v78, 7
    %v80 = vsub.s32 0, %v79
    %v81 = vrot.slane %v52, %v80
    %v82 = vlaneseq
    %v83 = vshrl.u32 %v82, 7
    %v84 = vsub.s32 0, %v83
    %v85 = vrot.slane %v66, %v84
    %v86 = vlaneseq
    %v87 = vshrl.u32 %v86, 7
    %v88 = vsub.s32 0, %v87
    %v89 = vrot.slane %v74, %v88
    %v90 = vlaneseq
    %v91 = vshrl.u32 %v90, 7
    %v92 = vsub.s32 0, %v91
    %v93 = vrot.slane %v76, %v92
    %v94 = vlaneseq
    %v95 = vshrl.u32 %v94, 7
    %v96 = vsub.s32 0, %v95
    %v97 = vrot.slane %v59, %v96
    %v98 = vlaneseq
    %v99 = vshrl.u32 %v98, 7
    %v100 = vsub.s32 0, %v99
    %v101 = vrot.slane %v73, %v100
    %v102 = vlaneseq
    %v103 = vshrl.u32 %v102, 7
    %v104 = vsub.s32 0, %v103
    %v105 = vrot.slane %v75, %v104
    %v106 = vlaneseq
    %v107 = vshrl.u32 %v106, 7
    %v108 = vsub.s32 0, %v107
    %v109 = vrot.slane %v77, %v108
    %v118 = vadd.f32 %v20, %v81
    %v119 = vadd.f32 %v21, %v85
    %v120 = vadd.f32 %v22, %v89
    %v121 = vadd.f32 %v23, %v93
    %v122 = vadd.f32 %v24, %v97
    %v123 = vadd.f32 %v25, %v101
    %v124 = vadd.f32 %v26, %v105
    %v125 = vadd.f32 %v27, %v109
    %vm126 = vcmask 254976
    %127 = vst.msk [vmem:[#allocation3] sm:$0x3] %vm126, %v118
    %128 = vst.msk [vmem:[#allocation3 + $0x2] sm:$0x3] %vm126, %v119
    %129 = vst.msk [vmem:[#allocation3 + $0x4] sm:$0x3] %vm126, %v120
    %130 = vst.msk [vmem:[#allocation3 + $0x6] sm:$0x3] %vm126, %v121
    %131 = vst.msk [vmem:[#allocation3 + $0x8] sm:$0x3] %vm126, %v122
    %132 = vst.msk [vmem:[#allocation3 + $0xa] sm:$0x3] %vm126, %v123
    %133 = vst.msk [vmem:[#allocation3 + $0xc] sm:$0x3] %vm126, %v124
    %134 = vst.msk [vmem:[#allocation3 + $0xe] sm:$0x3] %vm126, %v125
    // Predicated region
    $region14: #{tpu_custom_call.1} parent=1 // pred_check
      _
    $region15: #{tpu_custom_call.1} parent=1 // pred_check_branch
      %136 = sbr.rel (0) target = $region17
    $region16: #{tpu_custom_call.1} parent=1 // pred_region
      %s138 = ssub.s32 256, 256
      %139 = vsyncadd [#allocation4], %s138
      %s140 = sshll.u32 [#allocation3], 4
      %s141 = int_to_ptr.vmem [resolvable:$true] %s140
      %146 = dma.vmem_to_hbm [thread:$0]  %s141, 256, %s3, [#allocation4], 32, 32, 2
    $region17: #{tpu_custom_call.1} parent=1 // pred_fallthru
      _
    // Predicated region
    $region18: #{tpu_custom_call.1} parent=1 // pred_check
      _
    $region19: #{tpu_custom_call.1} parent=1 // pred_check_branch
      %148 = sbr.rel (0) target = $region21
    $region20: #{tpu_custom_call.1} parent=1 // pred_region
      %149 = dma.done [#allocation4], 256
    $region21: #{tpu_custom_call.1} parent=1 // pred_fallthru
      _
    %150 = vsyncpa [#allocation4], 1

</llo_original>
